<compile_context>
chip_gen: v7x
topology: tpu7x:2x2x1
jax: 0.10.0
libtpu: 0.0.40
codegen_flags: <defaults>
</compile_context>

<pallas_src>
import jax
import jax.numpy as jnp
from jax.experimental import pallas as pl
from jax.experimental.pallas import tpu as pltpu

EPSILON = 1e-20          # `epsilon` global used by MyLogSoftmax
PAD = 0                  # PAD token id
NEG_BIG = -1e9           # logit value for padded vocab columns (kills their exp())


def _round_up(x, m):
    return ((x + m - 1) // m) * m


def _vmem_limit(bytes_needed):
    # Leave headroom for double buffering but never ask for more than v7x's 64 MiB.
    return int(min(64 * 1024 * 1024, max(32 * 1024 * 1024, 2 * bytes_needed)))


# --------------------------------------------------------------------------- #
# Training kernel: online log-softmax over V tiles + in-loop gold-logit pick.
# grid = (N_pad // TN  [parallel],  V_pad // TV  [arbitrary / reduction])
# --------------------------------------------------------------------------- #
def _nll_kernel(feed_ref, w_ref, b_ref, gold_ref, wrow_ref, rowloss_ref,
                m_sc, s_sc, pick_sc):
    j = pl.program_id(1)

    @pl.when(j == 0)
    def _init():
        m_sc[...] = jnp.full(m_sc.shape, -jnp.inf, m_sc.dtype)
        s_sc[...] = jnp.zeros_like(s_sc)
        pick_sc[...] = jnp.zeros_like(pick_sc)

    # (TN, TV) logit tile on the MXU: bf16 operands, f32 accumulation.
    logits = jnp.dot(feed_ref[...], w_ref[...],
                     preferred_element_type=jnp.float32) + b_ref[...]

    # Online logsumexp (running max + running sum of exponentials).
    m_prev = m_sc[...]
    m_new = jnp.maximum(m_prev, jnp.max(logits, axis=-1, keepdims=True))
    s_sc[...] = s_sc[...] * jnp.exp(m_prev - m_new) + jnp.sum(
        jnp.exp(logits - m_new), axis=-1, keepdims=True)
    m_sc[...] = m_new

    # Pick logits[i, gold_i] when this V tile contains gold_i.
    tn, tv = logits.shape
    col = jax.lax.broadcasted_iota(jnp.int32, (tn, tv), 1) + j * tv
    hit = (col == gold_ref[...]).astype(jnp.float32)
    pick_sc[...] += jnp.sum(hit * logits, axis=-1, keepdims=True)

    @pl.when(j == pl.num_programs(1) - 1)
    def _finalize():
        log_norm = jnp.log(s_sc[...] + EPSILON) + m_sc[...]
        # wrow already folds gold_mask, ignore_index=PAD and weight[PAD]=0.
        rowloss_ref[...] = -(wrow_ref[...] * (pick_sc[...] - log_norm))


# --------------------------------------------------------------------------- #
# Inference kernel: -log_softmax(Linear(feed)) per row tile, full V (lane-dense).
# grid = (N_pad // TN  [parallel],)
# --------------------------------------------------------------------------- #
def _neglogp_kernel(feed_ref, w_ref, b_ref, out_ref):
    logits = jnp.dot(feed_ref[...], w_ref[...],
                     preferred_element_type=jnp.float32) + b_ref[...]
    x_max = jnp.max(logits, axis=-1, keepdims=True)
    log_norm = jnp.log(jnp.sum(jnp.exp(logits - x_max), axis=-1,
                               keepdims=True) + EPSILON) + x_max
    out_ref[...] = (log_norm - logits).astype(out_ref.dtype)   # == -logp


# --------------------------------------------------------------------------- #
# Wrapper (mirrors Classifier.forward for wargs.loss == 'nll_loss')
# --------------------------------------------------------------------------- #
def make_classifier_params(input_size, output_size, key):
    """Deterministic nn.Linear-style init. Returns W of shape (D, V), b of (V,)."""
    kw, kb = jax.random.split(key)
    bound = 1.0 / jnp.sqrt(jnp.float32(input_size))
    w = jax.random.uniform(kw, (input_size, output_size), jnp.float32, -bound, bound)
    b = jax.random.uniform(kb, (output_size,), jnp.float32, -bound, bound)
    return w, b


def classifier_forward(feed, w, b, gold=None, gold_mask=None,
                       compute_dtype=jnp.bfloat16, tile_n=256, tile_v=512):
    """Mirrors Classifier.forward (wargs.loss == 'nll_loss', self_norm_alpha=None)."""
    if feed.ndim == 3:                        # (T, B, D) -> (T*B, D), same as .view(-1, D)
        feed2 = feed.reshape(-1, feed.shape[-1])
    else:
        feed2 = feed
    N, D = feed2.shape
    V = w.shape[1]
    cd_size = jnp.dtype(compute_dtype).itemsize

    # Row tiling (pad N up with zero rows; padded rows contribute nothing).
    tn = min(tile_n, _round_up(max(N, 8), 8))
    n_pad = _round_up(N, tn)
    feed_p = jnp.pad(feed2, ((0, n_pad - N), (0, 0))).astype(compute_dtype)

    if gold is None:
        # ---------------- inference path: -log_softmax(Linear(feed)) -----------------
        w_p = w.astype(compute_dtype)
        b_p = b.reshape(1, V).astype(jnp.float32)
        per_step = (tn * D * cd_size + D * V * cd_size + V * 4 + tn * V * 4)
        vmem_bytes = 2 * per_step + 3 * tn * V * 4
        out = pl.pallas_call(
            _neglogp_kernel,
            grid=(n_pad // tn,),
            in_specs=[
                pl.BlockSpec((tn, D), lambda i: (i, 0)),   # feed row tile
                pl.BlockSpec((D, V), lambda i: (0, 0)),    # resident weight
                pl.BlockSpec((1, V), lambda i: (0, 0)),    # resident bias
            ],
            out_specs=pl.BlockSpec((tn, V), lambda i: (i, 0)),
            out_shape=jax.ShapeDtypeStruct((n_pad, V), jnp.float32),
            compiler_params=pltpu.CompilerParams(
                dimension_semantics=("parallel",),
                vmem_limit_bytes=_vmem_limit(vmem_bytes)),
        )(feed_p, w_p, b_p)
        return out[:N]

    # ---------------- training path: scalar NLL loss ---------------------------------
    assert gold.ndim == 2                     # matches `assert gold.dim() == 2`
    gold_flat = gold.reshape(-1).astype(jnp.int32)
    gmask_flat = gold_mask.reshape(-1).astype(jnp.float32)
    # NLLLoss weight[PAD]=0 and ignore_index=PAD are redundant with each other; fold
    # them together with the gold_mask multiply into one per-row weight.
    wrow = gmask_flat * (gold_flat != PAD).astype(jnp.float32)

    tv = min(tile_v, _round_up(V, 128))
    v_pad = _round_up(V, tv)

    w_p = jnp.pad(w, ((0, 0), (0, v_pad - V))).astype(compute_dtype)
    b_p = jnp.pad(b.astype(jnp.float32), (0, v_pad - V),
                  constant_values=NEG_BIG).reshape(1, v_pad)
    gold_p = jnp.pad(gold_flat, (0, n_pad - N),
                     constant_values=PAD).reshape(n_pad, 1)
    wrow_p = jnp.pad(wrow, (0, n_pad - N)).reshape(n_pad, 1)

    per_step = (tn * D * cd_size + D * tv * cd_size + tv * 4 + 3 * tn * 4)
    vmem_bytes = 2 * per_step + 3 * tn * 4 + 4 * tn * tv * 4

    rowloss = pl.pallas_call(
        _nll_kernel,
        grid=(n_pad // tn, v_pad // tv),
        in_specs=[
            pl.BlockSpec((tn, D), lambda i, j: (i, 0)),    # feed row tile
            pl.BlockSpec((D, tv), lambda i, j: (0, j)),    # weight vocab tile
            pl.BlockSpec((1, tv), lambda i, j: (0, j)),    # bias vocab tile
            pl.BlockSpec((tn, 1), lambda i, j: (i, 0)),    # gold indices
            pl.BlockSpec((tn, 1), lambda i, j: (i, 0)),    # per-row weight
        ],
        out_specs=pl.BlockSpec((tn, 1), lambda i, j: (i, 0)),
        out_shape=jax.ShapeDtypeStruct((n_pad, 1), jnp.float32),
        scratch_shapes=[pltpu.VMEM((tn, 1), jnp.float32),   # running max
                        pltpu.VMEM((tn, 1), jnp.float32),   # running sum-exp
                        pltpu.VMEM((tn, 1), jnp.float32)],  # picked gold logit
        compiler_params=pltpu.CompilerParams(
            dimension_semantics=("parallel", "arbitrary"),
            vmem_limit_bytes=_vmem_limit(vmem_bytes)),
    )(feed_p, w_p, b_p, gold_p, wrow_p)

    # Padded rows have wrow == 0 -> contribute 0. Sum-reduce to the scalar loss.
    return jnp.sum(rowloss)


# --------------------------------------------------------------------------- #
# Pure-JAX f32 reference (for a loose sanity check in __main__)
# --------------------------------------------------------------------------- #
def _ref_forward(feed, w, b, gold=None, gold_mask=None):
    feed2 = feed.reshape(-1, feed.shape[-1]).astype(jnp.float32)
    logits = feed2 @ w.astype(jnp.float32) + b.astype(jnp.float32)
    x_max = jnp.max(logits, axis=-1, keepdims=True)
    log_norm = jnp.log(jnp.sum(jnp.exp(logits - x_max), axis=-1,
                               keepdims=True) + EPSILON) + x_max
    logp = logits - log_norm
    if gold is None:
        return -logp
    g = gold.reshape(-1)
    gm = gold_mask.reshape(-1).astype(jnp.float32)
    picked = jnp.take_along_axis(logp, g[:, None], axis=1)[:, 0]
    not_pad = (g != PAD).astype(jnp.float32)
    return -jnp.sum(picked * gm * not_pad)


if __name__ == "__main__":
    key = jax.random.PRNGKey(0)
    T, B, D, V = 8, 2, 32, 128                 # seq, batch, input_size, output_size
    k_feed, k_gold, k_param = jax.random.split(key, 3)

    feed = jax.random.normal(k_feed, (T, B, D), jnp.float32)
    gold = jax.random.randint(k_gold, (T, B), 0, V).astype(jnp.int32)   # gold.dim() == 2
    gold_mask = (gold != PAD).astype(jnp.float32)

    w, b = make_classifier_params(D, V, k_param)

    # training path (gold provided): scalar NLL loss
    loss = classifier_forward(feed, w, b, gold=gold, gold_mask=gold_mask)
    # inference path (gold=None): -log_softmax(Linear(feed)) of shape (T*B, V)
    neglogp = classifier_forward(feed, w, b)
    jax.block_until_ready((loss, neglogp))

    # Loose sanity check vs. f32 reference (kernel uses bf16 MXU operands).
    ref_loss = _ref_forward(feed, w, b, gold, gold_mask)
    ref_nlp = _ref_forward(feed, w, b)
    assert jnp.allclose(loss, ref_loss, rtol=2e-2, atol=2e-1)
    assert jnp.allclose(neglogp, ref_nlp, rtol=2e-2, atol=1e-1)

    print("KERNEL_OK")
</pallas_src>

<mosaic_0001>
module attributes {stable_mosaic.version = 11 : i64} {
  func.func @_nll_kernel(%arg0: i32, %arg1: i32, %arg2: memref<16x32xbf16, #tpu.memory_space<vmem>>, %arg3: memref<32x128xbf16, #tpu.memory_space<vmem>>, %arg4: memref<1x128xf32, #tpu.memory_space<vmem>>, %arg5: memref<16x1xi32, #tpu.memory_space<vmem>>, %arg6: memref<16x1xf32, #tpu.memory_space<vmem>>, %arg7: memref<16x1xf32, #tpu.memory_space<vmem>>, %arg8: memref<16x1xf32, #tpu.memory_space<vmem>>, %arg9: memref<16x1xf32, #tpu.memory_space<vmem>>, %arg10: memref<16x1xf32, #tpu.memory_space<vmem>>) attributes {dimension_semantics = [#tpu.dimension_semantics<parallel>, #tpu.dimension_semantics<arbitrary>], iteration_bounds = array<i64: 1, 1>, scalar_prefetch = 0 : i64, scratch_operands = 3 : i64, tpu.core_type = #tpu.core_type<tc>, window_params = [{transform_indices = @transform_0, window_bounds = array<i64: 16, 32>}, {transform_indices = @transform_1, window_bounds = array<i64: 32, 128>}, {transform_indices = @transform_2, window_bounds = array<i64: 1, 128>}, {transform_indices = @transform_3, window_bounds = array<i64: 16, 1>}, {transform_indices = @transform_4, window_bounds = array<i64: 16, 1>}, {transform_indices = @transform_5, window_bounds = array<i64: 16, 1>}]} {
    %c0_i32 = arith.constant 0 : i32
    %0 = arith.cmpi eq, %arg1, %c0_i32 : i32
    %1 = arith.extui %0 : i1 to i32
    %c0_i32_0 = arith.constant 0 : i32
    %2 = arith.cmpi ne, %1, %c0_i32_0 : i32
    scf.if %2 {
      %cst_25 = arith.constant 0xFF800000 : f32
      %43 = vector.broadcast %cst_25 : f32 to vector<16x1xf32>
      %c0_26 = arith.constant 0 : index
      %c0_27 = arith.constant 0 : index
      %44 = vector.load %arg8[%c0_26, %c0_27] : memref<16x1xf32, #tpu.memory_space<vmem>>, vector<16x1xf32>
      tpu.vector_store %arg8[%c0_26, %c0_27], %43 {strides = array<i32>} : memref<16x1xf32, #tpu.memory_space<vmem>>, vector<16x1xf32>,
      %cst_28 = arith.constant 0.000000e+00 : f32
      %45 = vector.broadcast %cst_28 : f32 to vector<16x1xf32>
      %c0_29 = arith.constant 0 : index
      %c0_30 = arith.constant 0 : index
      %46 = vector.load %arg9[%c0_29, %c0_30] : memref<16x1xf32, #tpu.memory_space<vmem>>, vector<16x1xf32>
      tpu.vector_store %arg9[%c0_29, %c0_30], %45 {strides = array<i32>} : memref<16x1xf32, #tpu.memory_space<vmem>>, vector<16x1xf32>,
      %cst_31 = arith.constant 0.000000e+00 : f32
      %47 = vector.broadcast %cst_31 : f32 to vector<16x1xf32>
      %c0_32 = arith.constant 0 : index
      %c0_33 = arith.constant 0 : index
      %48 = vector.load %arg10[%c0_32, %c0_33] : memref<16x1xf32, #tpu.memory_space<vmem>>, vector<16x1xf32>
      tpu.vector_store %arg10[%c0_32, %c0_33], %47 {strides = array<i32>} : memref<16x1xf32, #tpu.memory_space<vmem>>, vector<16x1xf32>,
    } else {
    }
    %c0 = arith.constant 0 : index
    %c0_1 = arith.constant 0 : index
    %3 = vector.load %arg2[%c0, %c0_1] : memref<16x32xbf16, #tpu.memory_space<vmem>>, vector<16x32xbf16>
    %c0_2 = arith.constant 0 : index
    %c0_3 = arith.constant 0 : index
    %4 = vector.load %arg3[%c0_2, %c0_3] : memref<32x128xbf16, #tpu.memory_space<vmem>>, vector<32x128xbf16>
    %cst = arith.constant dense<0.000000e+00> : vector<16x128xf32>
    %5 = tpu.matmul %3, %4, %cst {dimension_numbers = #tpu.dot_dimension_numbers<[1], [0], [0], [1], [0, 0, 1, 1], [], []>} : vector<16x32xbf16>, vector<32x128xbf16>, vector<16x128xf32> -> vector<16x128xf32>
    %c0_4 = arith.constant 0 : index
    %c0_5 = arith.constant 0 : index
    %6 = vector.load %arg4[%c0_4, %c0_5] : memref<1x128xf32, #tpu.memory_space<vmem>>, vector<1x128xf32>
    %7 = vector.broadcast %6 : vector<1x128xf32> to vector<16x128xf32>
    %8 = arith.addf %5, %7 : vector<16x128xf32>
    %c0_6 = arith.constant 0 : index
    %c0_7 = arith.constant 0 : index
    %9 = vector.load %arg8[%c0_6, %c0_7] : memref<16x1xf32, #tpu.memory_space<vmem>>, vector<16x1xf32>
    %cst_8 = arith.constant dense<0xFF800000> : vector<16xf32>
    %10 = vector.multi_reduction <maximumf>, %8, %cst_8 [1] : vector<16x128xf32> to vector<16xf32>
    %11 = vector.shape_cast %10 : vector<16xf32> to vector<16x1xf32>
    %12 = arith.maximumf %9, %11 : vector<16x1xf32>
    %c0_9 = arith.constant 0 : index
    %c0_10 = arith.constant 0 : index
    %13 = vector.load %arg9[%c0_9, %c0_10] : memref<16x1xf32, #tpu.memory_space<vmem>>, vector<16x1xf32>
    %14 = arith.subf %9, %12 : vector<16x1xf32>
    %15 = math.exp %14 : vector<16x1xf32>
    %16 = arith.mulf %13, %15 : vector<16x1xf32>
    %17 = vector.broadcast %12 : vector<16x1xf32> to vector<16x128xf32>
    %18 = arith.subf %8, %17 : vector<16x128xf32>
    %19 = math.exp %18 : vector<16x128xf32>
    %cst_11 = arith.constant dense<0.000000e+00> : vector<16xf32>
    %20 = vector.multi_reduction <add>, %19, %cst_11 [1] : vector<16x128xf32> to vector<16xf32>
    %21 = vector.shape_cast %20 : vector<16xf32> to vector<16x1xf32>
    %22 = arith.addf %16, %21 : vector<16x1xf32>
    %c0_12 = arith.constant 0 : index
    %c0_13 = arith.constant 0 : index
    %23 = vector.load %arg9[%c0_12, %c0_13] : memref<16x1xf32, #tpu.memory_space<vmem>>, vector<16x1xf32>
    tpu.vector_store %arg9[%c0_12, %c0_13], %22 {strides = array<i32>} : memref<16x1xf32, #tpu.memory_space<vmem>>, vector<16x1xf32>,
    %c0_14 = arith.constant 0 : index
    %c0_15 = arith.constant 0 : index
    %24 = vector.load %arg8[%c0_14, %c0_15] : memref<16x1xf32, #tpu.memory_space<vmem>>, vector<16x1xf32>
    tpu.vector_store %arg8[%c0_14, %c0_15], %12 {strides = array<i32>} : memref<16x1xf32, #tpu.memory_space<vmem>>, vector<16x1xf32>,
    %25 = tpu.iota {dimensions = array<i32: 1>} : vector<16x128xi32>
    %c128_i32 = arith.constant 128 : i32
    %26 = arith.muli %arg1, %c128_i32 : i32
    %27 = vector.broadcast %26 : i32 to vector<16x128xi32>
    %28 = arith.addi %25, %27 : vector<16x128xi32>
    %c0_16 = arith.constant 0 : index
    %c0_17 = arith.constant 0 : index
    %29 = vector.load %arg5[%c0_16, %c0_17] : memref<16x1xi32, #tpu.memory_space<vmem>>, vector<16x1xi32>
    %30 = vector.broadcast %29 : vector<16x1xi32> to vector<16x128xi32>
    %31 = arith.cmpi eq, %28, %30 : vector<16x128xi32>
    %32 = arith.extui %31 : vector<16x128xi1> to vector<16x128xi32>
    %33 = arith.sitofp %32 : vector<16x128xi32> to vector<16x128xf32>
    %c0_18 = arith.constant 0 : index
    %c0_19 = arith.constant 0 : index
    %34 = vector.load %arg10[%c0_18, %c0_19] : memref<16x1xf32, #tpu.memory_space<vmem>>, vector<16x1xf32>
    %35 = arith.mulf %33, %8 : vector<16x128xf32>
    %cst_20 = arith.constant dense<0.000000e+00> : vector<16xf32>
    %36 = vector.multi_reduction <add>, %35, %cst_20 [1] : vector<16x128xf32> to vector<16xf32>
    %37 = vector.shape_cast %36 : vector<16xf32> to vector<16x1xf32>
    %38 = arith.addf %34, %37 : vector<16x1xf32>
    %c0_21 = arith.constant 0 : index
    %c0_22 = arith.constant 0 : index
    %39 = vector.load %arg10[%c0_21, %c0_22] : memref<16x1xf32, #tpu.memory_space<vmem>>, vector<16x1xf32>
    tpu.vector_store %arg10[%c0_21, %c0_22], %38 {strides = array<i32>} : memref<16x1xf32, #tpu.memory_space<vmem>>, vector<16x1xf32>,
    %c0_i32_23 = arith.constant 0 : i32
    %40 = arith.cmpi eq, %arg1, %c0_i32_23 : i32
    %41 = arith.extui %40 : i1 to i32
    %c0_i32_24 = arith.constant 0 : i32
    %42 = arith.cmpi ne, %41, %c0_i32_24 : i32
    scf.if %42 {
      %c0_25 = arith.constant 0 : index
      %c0_26 = arith.constant 0 : index
      %43 = vector.load %arg9[%c0_25, %c0_26] : memref<16x1xf32, #tpu.memory_space<vmem>>, vector<16x1xf32>
      %cst_27 = arith.constant 9.99999968E-21 : f32
      %44 = vector.broadcast %cst_27 : f32 to vector<16x1xf32>
      %45 = arith.addf %43, %44 : vector<16x1xf32>
      %46 = math.log %45 : vector<16x1xf32>
      %c0_28 = arith.constant 0 : index
      %c0_29 = arith.constant 0 : index
      %47 = vector.load %arg8[%c0_28, %c0_29] : memref<16x1xf32, #tpu.memory_space<vmem>>, vector<16x1xf32>
      %48 = arith.addf %46, %47 : vector<16x1xf32>
      %c0_30 = arith.constant 0 : index
      %c0_31 = arith.constant 0 : index
      %49 = vector.load %arg6[%c0_30, %c0_31] : memref<16x1xf32, #tpu.memory_space<vmem>>, vector<16x1xf32>
      %c0_32 = arith.constant 0 : index
      %c0_33 = arith.constant 0 : index
      %50 = vector.load %arg10[%c0_32, %c0_33] : memref<16x1xf32, #tpu.memory_space<vmem>>, vector<16x1xf32>
      %51 = arith.subf %50, %48 : vector<16x1xf32>
      %52 = arith.mulf %49, %51 : vector<16x1xf32>
      %cst_34 = arith.constant 0.000000e+00 : f32
      %53 = vector.broadcast %cst_34 : f32 to vector<16x1xf32>
      %54 = arith.subf %53, %52 : vector<16x1xf32>
      %c0_35 = arith.constant 0 : index
      %c0_36 = arith.constant 0 : index
      %55 = vector.load %arg7[%c0_35, %c0_36] : memref<16x1xf32, #tpu.memory_space<vmem>>, vector<16x1xf32>
      tpu.vector_store %arg7[%c0_35, %c0_36], %54 {strides = array<i32>} : memref<16x1xf32, #tpu.memory_space<vmem>>, vector<16x1xf32>,
    } else {
    }
    return
  }
  func.func @transform_0(%arg0: i32, %arg1: i32) -> (i32, i32) {
    %c0_i32 = arith.constant 0 : i32
    %c0_i32_0 = arith.constant 0 : i32
    return %arg0, %c0_i32 : i32, i32
  }
  func.func @transform_1(%arg0: i32, %arg1: i32) -> (i32, i32) {
    %c0_i32 = arith.constant 0 : i32
    %c0_i32_0 = arith.constant 0 : i32
    return %c0_i32, %arg1 : i32, i32
  }
  func.func @transform_2(%arg0: i32, %arg1: i32) -> (i32, i32) {
    %c0_i32 = arith.constant 0 : i32
    %c0_i32_0 = arith.constant 0 : i32
    return %c0_i32, %arg1 : i32, i32
  }
  func.func @transform_3(%arg0: i32, %arg1: i32) -> (i32, i32) {
    %c0_i32 = arith.constant 0 : i32
    %c0_i32_0 = arith.constant 0 : i32
    return %arg0, %c0_i32 : i32, i32
  }
  func.func @transform_4(%arg0: i32, %arg1: i32) -> (i32, i32) {
    %c0_i32 = arith.constant 0 : i32
    %c0_i32_0 = arith.constant 0 : i32
    return %arg0, %c0_i32 : i32, i32
  }
  func.func @transform_5(%arg0: i32, %arg1: i32) -> (i32, i32) {
    %c0_i32 = arith.constant 0 : i32
    %c0_i32_0 = arith.constant 0 : i32
    return %arg0, %c0_i32 : i32, i32
  }
}

</mosaic_0001>

<llo_original>
// kernel: tpu_custom_call.1
$region0: #{tpu_custom_call.1}
  #allocation0 [shape = 'u32[]', space=smem, size = 0x4, offset = 0x4, fixed_abs, tag = 'smem constant byte address 0x4 - core index']
  #allocation1 [shape = 'u32[144,128]{1,0:T(1,128)}', space=vmem, size = 0x12000, scoped, tag = 'internal scratch']
  #allocation2 [shape = 'f32[16,1]{1,0:T(8,128)}', space=vmem, size = 0x2000, scoped, tag = 'scratch operand']
  #allocation3 [shape = 'f32[16,1]{1,0:T(8,128)}', space=vmem, size = 0x2000, scoped, tag = 'scratch operand']
  #allocation4 [shape = 'f32[16,1]{1,0:T(8,128)}', space=vmem, size = 0x2000, scoped, tag = 'scratch operand']
  %s0 = inlined_call_operand.vmem [shape: bf16[16,32], index: 0, kind: input, shape index: {}]
  %s1 = inlined_call_operand.vmem [shape: bf16[32,128], index: 1, kind: input, shape index: {}]
  %s2 = inlined_call_operand.vmem [shape: f32[1,128], index: 2, kind: input, shape index: {}]
  %s3 = inlined_call_operand.vmem [shape: s32[16,1], index: 3, kind: input, shape index: {}]
  %s4 = inlined_call_operand.vmem [shape: f32[16,1], index: 4, kind: input, shape index: {}]
  %s5 = inlined_call_operand.vmem [shape: f32[16,1], index: 5, kind: output, shape index: {}]
  %s6 = sld [smem:[#allocation0]]
  $region38: #{tpu_custom_call.1} parent=0
    _
  %s8 = ssub.s32 1, %s6
  %s9 = scalar_select 0, %s8, %s6
  // Predicated region
  $region2: #{tpu_custom_call.1} parent=0 // pred_check
    _
  $region3: #{tpu_custom_call.1} parent=0 // pred_check_branch
    %11 = sbr.rel (0) target = $region5
  $region4: #{tpu_custom_call.1} parent=0 // pred_region
    _
  $region5: #{tpu_custom_call.1} parent=0 // pred_fallthru
    _
  // Predicated region
  $region6: #{tpu_custom_call.1} parent=0 // pred_check
    _
  $region7: #{tpu_custom_call.1} parent=0 // pred_check_branch
    %13 = sbr.rel (0) target = $region9
  $region8: #{tpu_custom_call.1} parent=0 // pred_region
    _
  $region9: #{tpu_custom_call.1} parent=0 // pred_fallthru
    _
  // Predicated region
  $region10: #{tpu_custom_call.1} parent=0 // pred_check
    _
  $region11: #{tpu_custom_call.1} parent=0 // pred_check_branch
    %15 = sbr.rel (0) target = $region13
  $region12: #{tpu_custom_call.1} parent=0 // pred_region
    _
  $region13: #{tpu_custom_call.1} parent=0 // pred_fallthru
    _
  // Predicated region
  $region14: #{tpu_custom_call.1} parent=0 // pred_check
    _
  $region15: #{tpu_custom_call.1} parent=0 // pred_check_branch
    %17 = sbr.rel (0) target = $region17
  $region16: #{tpu_custom_call.1} parent=0 // pred_region
    _
  $region17: #{tpu_custom_call.1} parent=0 // pred_fallthru
    _
  // Predicated region
  $region18: #{tpu_custom_call.1} parent=0 // pred_check
    _
  $region19: #{tpu_custom_call.1} parent=0 // pred_check_branch
    %19 = sbr.rel (0) target = $region21
  $region20: #{tpu_custom_call.1} parent=0 // pred_region
    _
  $region21: #{tpu_custom_call.1} parent=0 // pred_fallthru
    _
  %p21 = scmp.eq.s32.totalorder 0, 0
  // Predicated region
  $region22: #{tpu_custom_call.1} parent=0 // pred_check
    %p22 = pneg %p21
  $region23: #{tpu_custom_call.1} parent=0 // pred_check_branch
    %24 = sbr.rel (%p22) target = $region25
  $region24: #{tpu_custom_call.1} parent=0 // pred_region
    %vm25 = vcmask 7168
    %26 = vst.msk [vmem:[#allocation2] sm:$0xff] %vm25, -inf
    %27 = vst.msk [vmem:[#allocation2 + $0x8] sm:$0xff] %vm25, -inf
    %28 = vst.msk [vmem:[#allocation3] sm:$0xff] %vm25, 0.0
    %29 = vst.msk [vmem:[#allocation3 + $0x8] sm:$0xff] %vm25, 0.0
    %30 = vst.msk [vmem:[#allocation4] sm:$0xff] %vm25, 0.0
    %31 = vst.msk [vmem:[#allocation4 + $0x8] sm:$0xff] %vm25, 0.0
  $region25: #{tpu_custom_call.1} parent=0 // pred_fallthru
    _
  %v32 = vld [vmem:[%s0] sm:$0xf]
  %v33 = vld [vmem:[%s0 + $0x4] sm:$0xf]
  %v34 = vld [vmem:[%s1] sm:$0xf]
  %v35 = vld [vmem:[%s1 + $0x4] sm:$0xf]
  %v36 = vld [vmem:[%s1 + $0x8] sm:$0xf]
  %v37 = vld [vmem:[%s1 + $0xc] sm:$0xf]
  %v38 = vld [vmem:[%s2] sm:$0x1]
  %v40 = vlaneseq
  %v41 = vshrl.u32 %v40, 7
  %v42 = vsub.s32 0, %v41
  %v43 = vrot.slane %v38, %v42
  %v47 = vunpack.c.l.b16 %v32
  %v48 = vunpack.c.l.b16 %v33
  %v49 = vpack.c.b16 %v48, %v47
  %v54 = vunpack.c.l.b16 %v34
  %v55 = vunpack.c.l.b16 %v35
  %v56 = vunpack.c.l.b16 %v36
  %v57 = vunpack.c.l.b16 %v37
  %v58 = vpack.c.b16 %v55, %v54
  %v59 = vpack.c.b16 %v57, %v56
  %vm62 = vcmask 261120
  %v64 = vsel %vm62, %v49, 0
  %66 = vmatprep.subr.bf16.mxu0 0
  %67 = vmatpush1.bf16.msra.mxu0 %v58
  %68 = vmatprep.subr.bf16.mxu0 0
  %69 = vmatpush1.bf16.msra.mxu0 %v59
  %70 = vmatprep.subr.bf16.mxu0 0
  %71 = vmatpush1.bf16.msra.mxu0 0
  %72 = vmatprep.subr.bf16.mxu0 0
  %73 = vmatpush1.bf16.msra.mxu0 0
  %74 = vmatprep.subr.bf16.mxu0 0
  %75 = vmatpush1.bf16.msra.mxu0 0
  %76 = vmatprep.subr.bf16.mxu0 0
  %77 = vmatpush1.bf16.msra.mxu0 0
  %78 = vmatprep.subr.bf16.mxu0 0
  %79 = vmatpush1.bf16.msra.mxu0 0
  %80 = vmatprep.subr.bf16.mxu0 0
  %81 = vmatpush1.bf16.msra.mxu0 0
  %82 = vmatprep.subr.bf16.mxu0 0
  %83 = vmatpush1.bf16.msra.mxu0 0
  %84 = vmatprep.subr.bf16.mxu0 0
  %85 = vmatpush1.bf16.msra.mxu0 0
  %86 = vmatprep.subr.bf16.mxu0 0
  %87 = vmatpush1.bf16.msra.mxu0 0
  %88 = vmatprep.subr.bf16.mxu0 0
  %89 = vmatpush1.bf16.msra.mxu0 0
  %90 = vmatprep.subr.bf16.mxu0 0
  %91 = vmatpush1.bf16.msra.mxu0 0
  %92 = vmatprep.subr.bf16.mxu0 0
  %93 = vmatpush1.bf16.msra.mxu0 0
  %94 = vmatprep.subr.bf16.mxu0 0
  %95 = vmatpush1.bf16.msra.mxu0 0
  %96 = vmatprep.subr.bf16.mxu0 0
  %97 = vmatpush1.bf16.msra.mxu0 0
  %98 = vmatprep.mubr.bf16.mxu0 0
  %99 = vmatmul.mubr.bf16.gmra.mrb[0].mxu0 %v64
  %v100 = vpop.f32.mrb[0].mxu0
  %v101 = vadd.f32 %v43, %v100
  %v102 = vpop.f32.mrb[0].mxu0
  %v103 = vpop.f32.mrb[0].mxu0
  %v104 = vadd.f32 %v43, %v103
  %v105 = vpop.f32.mrb[0].mxu0
  %106 = vdwg.mxu0
  %v107 = vld [vmem:[#allocation2] sm:$0xff]
  %v108 = vld [vmem:[#allocation2 + $0x8] sm:$0xff]
  %109 = vmax.xlane.f32.xlu0 %v101
  %v110 = vpop.xlane.xlu0 %109
  %111 = vmax.xlane.f32.xlu0 %v104
  %v112 = vpop.xlane.xlu0 %111
  %v113 = vmax.f32 %v107, %v110
  %v114 = vmax.f32 %v108, %v112
  %v115 = vld [vmem:[#allocation3] sm:$0xff]
  %v116 = vld [vmem:[#allocation3 + $0x8] sm:$0xff]
  %v117 = vsub.f32 %v107, %v113
  %v118 = vsub.f32 %v108, %v114
  %v119 = vmul.f32 %v117, 1.442695
  %v120 = vpow.pop %v119
  %v121 = vmul.f32 %v118, 1.442695
  %v122 = vpow.pop %v121
  %v123 = vmul.f32 %v115, %v120
  %v124 = vmul.f32 %v116, %v122
  %126 = vset.pattern.permute.xlu0 0
  %127 = vperm.xlu0 %126, %v113
  %v128 = vpop.permute.xlu0 %127
  %131 = vset.pattern.permute.xlu0 0
  %132 = vperm.xlu0 %131, %v114
  %v133 = vpop.permute.xlu0 %132
  %v135 = vsub.f32 %v101, %v128
  %v136 = vsub.f32 %v104, %v133
  %v137 = vmul.f32 %v135, 1.442695
  %v138 = vpow.pop %v137
  %v139 = vmul.f32 %v136, 1.442695
  %v140 = vpow.pop %v139
  %141 = vadd.xlane.f32.xlu0 %v138
  %v142 = vpop.xlane.xlu0 %141
  %143 = vadd.xlane.f32.xlu0 %v140
  %v144 = vpop.xlane.xlu0 %143
  %v145 = vadd.f32 %v123, %v142
  %v146 = vadd.f32 %v124, %v144
  %vm147 = vcmask 7168
  %148 = vst.msk [vmem:[#allocation3] sm:$0xff] %vm147, %v145
  %149 = vst.msk [vmem:[#allocation3 + $0x8] sm:$0xff] %vm147, %v146
  %150 = vst.msk [vmem:[#allocation2] sm:$0xff] %vm147, %v113
  %151 = vst.msk [vmem:[#allocation2 + $0x8] sm:$0xff] %vm147, %v114
  %v152 = vlaneseq
  %v153 = vand.u32 %v152, 127
  %s154 = smul.u32 0, 128
  %v155 = vstv %s154
  %v156 = vadd.s32 %v153, %v155
  %v157 = vld [vmem:[%s3] sm:$0xff]
  %v158 = vld [vmem:[%s3 + $0x8] sm:$0xff]
  %159 = vset.pattern.permute.xlu0 0
  %160 = vperm.xlu0 %159, %v157
  %v161 = vpop.permute.xlu0 %160
  %162 = vset.pattern.permute.xlu0 0
  %163 = vperm.xlu0 %162, %v158
  %v164 = vpop.permute.xlu0 %163
  %vm165 = vcmp.eq.s32.totalorder %v156, %v161
  %vm166 = vcmp.eq.s32.totalorder %v156, %v164
  %v167 = vsel %vm165, 1, 0
  %v168 = vsel %vm166, 1, 0
  %v169 = vcvt.s32.f32 %v167
  %v170 = vcvt.s32.f32 %v168
  %v171 = vld [vmem:[#allocation4] sm:$0xff]
  %v172 = vld [vmem:[#allocation4 + $0x8] sm:$0xff]
  %v173 = vmul.f32 %v169, %v101
  %v174 = vmul.f32 %v170, %v104
  %175 = vadd.xlane.f32.xlu0 %v173
  %v176 = vpop.xlane.xlu0 %175
  %177 = vadd.xlane.f32.xlu0 %v174
  %v178 = vpop.xlane.xlu0 %177
  %v179 = vadd.f32 %v171, %v176
  %v180 = vadd.f32 %v172, %v178
  %181 = vst.msk [vmem:[#allocation4] sm:$0xff] %vm147, %v179
  %182 = vst.msk [vmem:[#allocation4 + $0x8] sm:$0xff] %vm147, %v180
  // Predicated region
  $region26: #{tpu_custom_call.1} parent=0 // pred_check
    %p183 = pneg %p21
  $region27: #{tpu_custom_call.1} parent=0 // pred_check_branch
    %185 = sbr.rel (%p183) target = $region29
  $region28: #{tpu_custom_call.1} parent=0 // pred_region
    %v186 = vld [vmem:[#allocation3] sm:$0xff]
    %v187 = vld [vmem:[#allocation3 + $0x8] sm:$0xff]
    %v188 = vadd.f32 %v186, 1e-20
    %v189 = vadd.f32 %v187, 1e-20
    %v190 = vlog2.pop %v188
    %v191 = vmul.f32 %v190, 0.6931472
    %v192 = vlog2.pop %v189
    %v193 = vmul.f32 %v192, 0.6931472
    %v194 = vld [vmem:[#allocation2] sm:$0xff]
    %v195 = vld [vmem:[#allocation2 + $0x8] sm:$0xff]
    %v196 = vadd.f32 %v191, %v194
    %v197 = vadd.f32 %v193, %v195
    %v198 = vld [vmem:[%s4] sm:$0xff]
    %v199 = vld [vmem:[%s4 + $0x8] sm:$0xff]
    %v200 = vld [vmem:[#allocation4] sm:$0xff]
    %v201 = vld [vmem:[#allocation4 + $0x8] sm:$0xff]
    %v202 = vsub.f32 %v200, %v196
    %v203 = vsub.f32 %v201, %v197
    %v204 = vmul.f32 %v198, %v202
    %v205 = vmul.f32 %v199, %v203
    %v206 = vsub.f32 0.0, %v204
    %v207 = vsub.f32 0.0, %v205
    %208 = vst.msk [vmem:[%s5] sm:$0xff] %vm147, %v206
    %209 = vst.msk [vmem:[%s5 + $0x8] sm:$0xff] %vm147, %v207
  $region29: #{tpu_custom_call.1} parent=0 // pred_fallthru
    _
  // Predicated region
  $region30: #{tpu_custom_call.1} parent=0 // pred_check
    _
  $region31: #{tpu_custom_call.1} parent=0 // pred_check_branch
    %211 = sbr.rel (0) target = $region33
  $region32: #{tpu_custom_call.1} parent=0 // pred_region
    _
  $region33: #{tpu_custom_call.1} parent=0 // pred_fallthru
    _
  // Predicated region
  $region34: #{tpu_custom_call.1} parent=0 // pred_check
    _
  $region35: #{tpu_custom_call.1} parent=0 // pred_check_branch
    %213 = sbr.rel (0) target = $region37
  $region36: #{tpu_custom_call.1} parent=0 // pred_region
    _
  $region37: #{tpu_custom_call.1} parent=0 // pred_fallthru
    _

</llo_original>
